<compile_context>
chip_gen: v6e
topology: v6e:2x2x1
jax: 0.10.0
libtpu: 0.0.40
codegen_flags: <defaults>
</compile_context>

<pallas_src>
import math

import jax
import jax.numpy as jnp
from jax.experimental import pallas as pl
from jax.experimental.pallas import tpu as pltpu


_LANE = 128
# Packed-sublane row multiple per element size (sub-32-bit dtypes pack along
# sublanes: bf16 -> 16 rows/vreg, int8/fp8 -> 32).
_SUBLANE_MULT = {1: 32, 2: 16, 4: 8}

# v5e/v6e: 4 MiB blocks -> 16 MiB of double-buffered in+out VMEM.
_DEFAULT_BLOCK_BYTES = 4 * 1024 * 1024
_DEFAULT_VMEM_LIMIT = 32 * 1024 * 1024
# v7x: 8 MiB blocks (32 MiB of buffers) still fit the 64 MiB physical VMEM and
# cut per-step overhead to <10% at ~3.2 TB/s HBM.
_V7X_BLOCK_BYTES = 8 * 1024 * 1024
_V7X_VMEM_LIMIT = 48 * 1024 * 1024

# Rare lane-unaligned path: 512 KiB chunks, chunk element count a multiple of
# 32768 (covers (8|16|32, 128) packed tiles for every itemsize).
_RAGGED_BLOCK_BYTES = 512 * 1024
_RAGGED_ELEM_MULT = 32 * 1024


def _copy_kernel(x_ref, o_ref):
    # Identity copy of the current block (2-D or 1-D tile).
    o_ref[...] = x_ref[...]


def _pick_block_budget():
    """(block_bytes, vmem_limit_bytes), generation-aware (v7x gets bigger blocks)."""
    block_bytes, vmem_limit = _DEFAULT_BLOCK_BYTES, _DEFAULT_VMEM_LIMIT
    try:
        cap = getattr(pltpu.get_tpu_info(), "vmem_capacity_bytes", None)
        if cap is not None and cap <= 64 * 1024 * 1024:   # v7x signature
            block_bytes, vmem_limit = _V7X_BLOCK_BYTES, _V7X_VMEM_LIMIT
    except Exception:
        pass
    return block_bytes, vmem_limit


def _compiler_params(vmem_limit):
    return pltpu.CompilerParams(
        dimension_semantics=("parallel",),
        vmem_limit_bytes=vmem_limit,
    )


def _copy_aligned_2d(flat1d, block_bytes=None, vmem_limit=None):
    """Stream a (numel//128, 128) view once through the copy kernel.

    Requires numel % 128 == 0.  The row dimension uses a pl.cdiv grid, so the
    last block may be partial (masked by the pipeline) -- no divisibility
    requirement on rows, no tail, no concatenate.
    """
    if block_bytes is None or vmem_limit is None:
        auto_block, auto_vmem = _pick_block_budget()
        block_bytes = block_bytes or auto_block
        vmem_limit = vmem_limit or auto_vmem

    numel = flat1d.shape[0]
    itemsize = flat1d.dtype.itemsize
    sub = _SUBLANE_MULT.get(itemsize, 8)
    rows = numel // _LANE
    x2d = flat1d.reshape(rows, _LANE)            # bitcast of a contiguous buffer: free

    # Big blocks to amortize the ~0.35 us per-step overhead, rounded to the
    # packed-sublane multiple, and never larger than the (rounded-up) array.
    target_rows = max(sub, (block_bytes // (_LANE * itemsize)) // sub * sub)
    block_rows = min(target_rows, pl.cdiv(rows, sub) * sub)
    grid = (pl.cdiv(rows, block_rows),)

    out2d = pl.pallas_call(
        _copy_kernel,
        out_shape=jax.ShapeDtypeStruct((rows, _LANE), flat1d.dtype),
        grid=grid,
        in_specs=[pl.BlockSpec((block_rows, _LANE), lambda i: (i, 0))],
        out_specs=pl.BlockSpec((block_rows, _LANE), lambda i: (i, 0)),
        compiler_params=_compiler_params(vmem_limit),
    )(x2d)
    return out2d.reshape(numel)


def _copy_ragged_1d(flat1d, vmem_limit=None):
    """Copy a lane-unaligned flat buffer in one pass (1-D blocked, no tail).

    Small arrays use a single block equal to the full dim (no alignment
    constraint at all); larger ones use 512 KiB chunks with a masked partial
    last block.
    """
    if vmem_limit is None:
        _, vmem_limit = _pick_block_budget()
    numel = flat1d.shape[0]
    itemsize = flat1d.dtype.itemsize
    chunk = max(
        _RAGGED_ELEM_MULT,
        (_RAGGED_BLOCK_BYTES // itemsize) // _RAGGED_ELEM_MULT * _RAGGED_ELEM_MULT,
    )
    block = min(numel, chunk)                    # == full dim when the array is small
    grid = (pl.cdiv(numel, block),)

    return pl.pallas_call(
        _copy_kernel,
        out_shape=jax.ShapeDtypeStruct((numel,), flat1d.dtype),
        grid=grid,
        in_specs=[pl.BlockSpec((block,), lambda i: (i,))],
        out_specs=pl.BlockSpec((block,), lambda i: (i,)),
        compiler_params=_compiler_params(vmem_limit),
    )(flat1d)


def _materialized_copy(flat1d):
    """Identity-copy a flat contiguous buffer through a Pallas kernel (1 HBM pass)."""
    numel = flat1d.shape[0]
    if numel % _LANE == 0:
        return _copy_aligned_2d(flat1d)
    return _copy_ragged_1d(flat1d)


def _resolve_shape(target_shape, numel):
    """Resolve a single -1 entry, exactly like torch.Tensor.view."""
    shape = list(target_shape)
    neg = [i for i, s in enumerate(shape) if s == -1]
    if len(neg) > 1:
        raise ValueError("only one dimension can be -1")
    if neg:
        known = 1
        for i, s in enumerate(shape):
            if i != neg[0]:
                known *= s
        if known == 0 or numel % known != 0:
            raise ValueError(f"cannot view {numel} elements as {target_shape}")
        shape[neg[0]] = numel // known
    if math.prod(shape) != numel:
        raise ValueError(f"cannot view {numel} elements as {target_shape}")
    return tuple(shape)


class Reshape:
    """JAX/Pallas equivalent of the PyTorch Reshape(nn.Module).

    materialize=False (recommended in production): metadata-only reshape, ~0 cost.
    materialize=True  (default here): route the contiguous buffer once through
    the Pallas identity-copy kernel (always returns a fresh buffer).
    """

    def __init__(self, *args, materialize=True):
        self.shape = args
        self.materialize = materialize

    def __call__(self, x):
        numel = math.prod(x.shape)
        out_shape = _resolve_shape(self.shape, numel)
        if not self.materialize or numel == 0:
            return x.reshape(out_shape)
        flat1d = x.reshape(-1)   # contiguous row-major, same as torch .view
        return _materialized_copy(flat1d).reshape(out_shape)


if __name__ == "__main__":
    key = jax.random.PRNGKey(0)

    # Input consistent with a conv-style NCHW tensor: (2, 4, 16, 16).
    x = jax.random.normal(key, (2, 4, 16, 16), dtype=jnp.float32)

    # Typical use: flatten spatial dims per batch, e.g. Reshape(2, -1).
    y = jax.block_until_ready(Reshape(2, -1)(x))
    assert y.shape == (2, 4 * 16 * 16)
    assert jnp.array_equal(y, x.reshape(2, -1))

    # Second case: reshape to (2, 4, 256).
    y2 = jax.block_until_ready(Reshape(2, 4, 256)(x))
    assert y2.shape == (2, 4, 256)
    assert jnp.array_equal(y2, x.reshape(2, 4, 256))

    # bf16 with a lane-unaligned size (numel % 128 != 0): handled in one pass
    # by the 1-D copy path -- no bulk/tail split, no concatenate.
    xb = jax.random.normal(jax.random.PRNGKey(0), (3, 5, 300), dtype=jnp.bfloat16)
    y3 = jax.block_until_ready(Reshape(-1)(xb))
    assert y3.shape == (3 * 5 * 300,)
    assert jnp.array_equal(y3, xb.reshape(-1))

    # Exercise the multi-step pipeline + masked partial last block at a small
    # size by forcing tiny blocks: rows=33, block_rows=16 -> grid=3, last
    # block has 1 valid row.
    xm = jax.random.normal(jax.random.PRNGKey(0), (2, 4, 16, 33), dtype=jnp.float32)
    ym = jax.block_until_ready(
        _copy_aligned_2d(xm.reshape(-1), block_bytes=8 * 1024,
                         vmem_limit=_DEFAULT_VMEM_LIMIT))
    assert jnp.array_equal(ym, xm.reshape(-1))

    # Zero-cost metadata-only path (production recommendation).
    y4 = jax.block_until_ready(Reshape(4, -1, 16, materialize=False)(x))
    assert y4.shape == (4, 32, 16)
    assert jnp.array_equal(y4, x.reshape(4, 32, 16))

    print("KERNEL_OK")
</pallas_src>

<mosaic_0001>
module attributes {stable_mosaic.version = 11 : i64} {
  func.func @_copy_kernel(%arg0: i32, %arg1: memref<16x128xf32, #tpu.memory_space<vmem>>, %arg2: memref<16x128xf32, #tpu.memory_space<vmem>>) attributes {dimension_semantics = [#tpu.dimension_semantics<parallel>], iteration_bounds = array<i64: 1>, scalar_prefetch = 0 : i64, scratch_operands = 0 : i64, tpu.core_type = #tpu.core_type<tc>, window_params = [{transform_indices = @transform_0, window_bounds = array<i64: 16, 128>}, {transform_indices = @transform_1, window_bounds = array<i64: 16, 128>}]} {
    %c0 = arith.constant 0 : index
    %c0_0 = arith.constant 0 : index
    %0 = vector.load %arg1[%c0, %c0_0] : memref<16x128xf32, #tpu.memory_space<vmem>>, vector<16x128xf32>
    %c0_1 = arith.constant 0 : index
    %c0_2 = arith.constant 0 : index
    %1 = vector.load %arg2[%c0_1, %c0_2] : memref<16x128xf32, #tpu.memory_space<vmem>>, vector<16x128xf32>
    tpu.vector_store %arg2[%c0_1, %c0_2], %0 {strides = array<i32>} : memref<16x128xf32, #tpu.memory_space<vmem>>, vector<16x128xf32>,
    return
  }
  func.func @transform_0(%arg0: i32) -> (i32, i32) {
    %c0_i32 = arith.constant 0 : i32
    %c0_i32_0 = arith.constant 0 : i32
    return %arg0, %c0_i32 : i32, i32
  }
  func.func @transform_1(%arg0: i32) -> (i32, i32) {
    %c0_i32 = arith.constant 0 : i32
    %c0_i32_0 = arith.constant 0 : i32
    return %arg0, %c0_i32 : i32, i32
  }
}

</mosaic_0001>

<llo_original>
// kernel: tpu_custom_call.1
$region0: #{tpu_custom_call.1}
  #allocation0 [shape = 'u32[]', space=smem, size = 0x4, offset = 0x4, fixed_abs, tag = 'smem constant byte address 0x4 - core index']
  #allocation1 [shape = 'u32[144,128]{1,0:T(1,128)}', space=vmem, size = 0x12000, scoped, tag = 'internal scratch']
  %s0 = inlined_call_operand.hbm [shape: f32[16,128], index: 0, kind: input, shape index: {}]
  %s1 = inlined_call_operand.hbm [shape: f32[16,128], index: 1, kind: output, shape index: {}]
  %s2 = sld [smem:[#allocation0]]
  $region18: #{tpu_custom_call.1} parent=0
    _
  %s4 = ssub.s32 1, %s2
  %s5 = scalar_select 0, %s4, %s2
  $region1: #{tpu_custom_call.1} parent=0
    #allocation2 [shape = 'u8[8192]{0}', space=vmem, size = 0x2000, scoped, tag = 'input window, operand 0, single buffered']
    #allocation3 [shape = 's32[1]{0}', space=sflag, size = 0x4, scoped, tag = 'scoped memory for tpu_custom_call.1']
    #allocation4 [shape = 's32[1]{0}', space=sflag, size = 0x4, scoped, tag = 'scoped memory for tpu_custom_call.1']
    #allocation5 [shape = 'u8[8192]{0}', space=vmem, size = 0x2000, scoped, tag = 'output window, operand 0, single buffered']
    %6 = vsyncpa [#allocation3], 0
    %7 = vsyncpa [#allocation4], 0
    // Predicated region
    $region2: #{tpu_custom_call.1} parent=1 // pred_check
      _
    $region3: #{tpu_custom_call.1} parent=1 // pred_check_branch
      %9 = sbr.rel (0) target = $region5
    $region4: #{tpu_custom_call.1} parent=1 // pred_region
      %s11 = ssub.s32 256, 256
      %12 = vsyncadd [#allocation3], %s11
      %s13 = sshll.u32 [#allocation2], 4
      %s14 = int_to_ptr.vmem [resolvable:$true] %s13
      %19 = dma.hbm_to_vmem [thread:$0]  %s0, 256, %s14, [#allocation3], 128, 128, 8
    $region5: #{tpu_custom_call.1} parent=1 // pred_fallthru
      _
    // Predicated region
    $region6: #{tpu_custom_call.1} parent=1 // pred_check
      _
    $region7: #{tpu_custom_call.1} parent=1 // pred_check_branch
      %21 = sbr.rel (0) target = $region9
    $region8: #{tpu_custom_call.1} parent=1 // pred_region
      %22 = dma.done [#allocation3], 256
    $region9: #{tpu_custom_call.1} parent=1 // pred_fallthru
      _
    %v23 = vld [vmem:[#allocation2] sm:$0xff]
    %v24 = vld [vmem:[#allocation2 + $0x8] sm:$0xff]
    %25 = vst [vmem:[#allocation5] sm:$0xff] %v23
    %26 = vst [vmem:[#allocation5 + $0x8] sm:$0xff] %v24
    // Predicated region
    $region10: #{tpu_custom_call.1} parent=1 // pred_check
      _
    $region11: #{tpu_custom_call.1} parent=1 // pred_check_branch
      %28 = sbr.rel (0) target = $region13
    $region12: #{tpu_custom_call.1} parent=1 // pred_region
      %s30 = ssub.s32 256, 256
      %31 = vsyncadd [#allocation4], %s30
      %s32 = sshll.u32 [#allocation5], 4
      %s33 = int_to_ptr.vmem [resolvable:$true] %s32
      %38 = dma.vmem_to_hbm [thread:$0]  %s33, 256, %s1, [#allocation4], 128, 128, 8
    $region13: #{tpu_custom_call.1} parent=1 // pred_fallthru
      _
    // Predicated region
    $region14: #{tpu_custom_call.1} parent=1 // pred_check
      _
    $region15: #{tpu_custom_call.1} parent=1 // pred_check_branch
      %40 = sbr.rel (0) target = $region17
    $region16: #{tpu_custom_call.1} parent=1 // pred_region
      %41 = dma.done [#allocation4], 256
    $region17: #{tpu_custom_call.1} parent=1 // pred_fallthru
      _
    %42 = vsyncpa [#allocation3], 1
    %43 = vsyncpa [#allocation4], 1

</llo_original>
